<compile_context>
chip_gen: v7x
topology: tpu7x:2x2x1
jax: 0.10.0
libtpu: 0.0.40
codegen_flags: <defaults>
</compile_context>

<pallas_src>
import jax
import jax.numpy as jnp
from jax import lax
from jax.experimental import pallas as pl
from jax.experimental.pallas import tpu as pltpu


_CAND_LANES = 128      # candidate-topic lane width (one vreg lane row) >= max clusters + 1
_NEG = -1e30


# ----------------------------------------------------------------------------
# The whole forward pass (fused encoders + sequential clustering) in one kernel
# ----------------------------------------------------------------------------
def _ncp_kernel(x_ref, w1_ref, b1_ref, a_ref, w2p_ref, b2p_ref, c_ref, g_ref, o_ref):
    N, B, C = g_ref.shape          # n_samples, batch, candidate lanes

    # ---- fused wc/us encoder, collapsed straight into the bc/lp projections ----
    # x is sample-major: row = i*B + b.
    h = jnp.dot(x_ref[...], w1_ref[...], preferred_element_type=jnp.float32) + b1_ref[...]
    h = jnp.where(h > 0.0, h, a_ref[...] * h)                 # per-column PReLU (wc | us)
    proj = jnp.dot(h, w2p_ref[...], preferred_element_type=jnp.float32) + b2p_ref[...]
    q = proj[:, 0:1]               # (N*B, 1): q_i = wc_i . (Wbc @ vbc)
    u = proj[:, 1:2]               # (N*B, 1): u_i = us_i . vus

    c = c_ref[...]                 # (1, 1): bbc . vbc
    lane = lax.broadcasted_iota(jnp.int32, (B, C), 1).astype(jnp.float32)      # (B, C)
    lane_row = lax.broadcasted_iota(jnp.int32, (1, C), 1).astype(jnp.float32)  # (1, C)
    pos_row = lax.broadcasted_iota(jnp.int32, (1, N), 1).astype(jnp.float32)   # (1, N)

    # ---- Encoder.build ----
    Q = q[0:B]                                     # sum of q over assigned samples (= q_0)
    U = jnp.zeros((B, 1), jnp.float32)
    for j in range(2, N):                          # US = us[:, 2:].sum(1), projected
        U = U + u[j * B:(j + 1) * B]
    Kf = jnp.ones((1, 1), jnp.float32)             # n_topics
    prev_new = jnp.zeros((1, 1), jnp.float32)      # 1.0 iff topics[i-1] opened a new cluster
    topics = jnp.zeros((1, N), jnp.float32)        # topics[0] = topics[1] = 0 (never sampled)

    # Static unroll over samples: all slice offsets are static, carried state is tiny.
    for i in range(2, N):
        # ---- Encoder.update(i, topics) ----
        Kf = Kf + prev_new                         # == unique(topics[:i]).shape[0]
        Q = Q + q[(i - 1) * B:i * B]               # both update branches add wc[:, i-1]
        if i == N - 1:
            U = jnp.zeros_like(U)
        else:
            U = U - u[i * B:(i + 1) * B]

        # ---- Encoder.sample(i): K+1 candidate log-probs (bc/lp linearity collapse) ----
        # existing topic k : (S + wc_i).Wbc.vbc + Kf*bbc.vbc + US.vus = Q + q_i + Kf*c + U
        # new topic        : same + c
        base = Q + q[i * B:(i + 1) * B] + U + Kf * c                      # (B, 1)
        logits = jnp.where(lane < Kf, base,
                           jnp.where(lane == Kf, base + c, _NEG))         # (B, C)

        # categorical sample via Gumbel-max with precomputed noise (no in-kernel PRNG)
        noisy = logits + g_ref[i]                                         # (B, C)
        mx = jnp.max(noisy, axis=1, keepdims=True)                        # (B, 1)
        samp = jnp.min(jnp.where(noisy == mx, lane, float(C)),
                       axis=1, keepdims=True)                             # (B, 1)

        # torch.mode across the batch (ties -> smallest topic id)
        counts = jnp.sum((samp == lane).astype(jnp.float32),
                         axis=0, keepdims=True)                           # (1, C)
        mc = jnp.max(counts, axis=1, keepdims=True)
        mode = jnp.min(jnp.where(counts == mc, lane_row, float(C)),
                       axis=1, keepdims=True)                             # (1, 1)

        topics = jnp.where(pos_row == float(i), mode, topics)
        prev_new = (mode == Kf).astype(jnp.float32)

    o_ref[...] = topics.astype(jnp.int32)


def ncp_pallas(x, w1, b1, alpha, w2p, b2p, c, gumbel):
    N = gumbel.shape[0]
    vmem = lambda: pl.BlockSpec(memory_space=pltpu.MemorySpace.VMEM)
    return pl.pallas_call(
        _ncp_kernel,
        out_shape=jax.ShapeDtypeStruct((1, N), jnp.int32),
        in_specs=[vmem() for _ in range(8)],
        out_specs=vmem(),
    )(x, w1, b1, alpha, w2p, b2p, c, gumbel)


# ----------------------------------------------------------------------------
# Parameter initialization (PyTorch-Linear-style uniform init)
# ----------------------------------------------------------------------------
def init_params(key, F, H=32, Dwc=32, Dbc=64):
    keys = jax.random.split(key, 6)

    def lin(k, fi, fo, bias=True):
        kw, kb = jax.random.split(k)
        bound = 1.0 / (fi ** 0.5)
        W = jax.random.uniform(kw, (fi, fo), jnp.float32, -bound, bound)
        b = jax.random.uniform(kb, (fo,), jnp.float32, -bound, bound) if bias else None
        return W, b

    p = {}
    p["wc_w1"], p["wc_b1"] = lin(keys[0], F, H)
    p["wc_w2"], p["wc_b2"] = lin(keys[1], H, Dwc)
    p["wc_a"] = jnp.float32(0.25)                        # PReLU alpha
    p["us_w1"], p["us_b1"] = lin(keys[2], F, H)
    p["us_w2"], p["us_b2"] = lin(keys[3], H, Dwc)
    p["us_a"] = jnp.float32(0.25)
    p["bc_w"], p["bc_b"] = lin(keys[4], Dwc, Dbc)
    wlp, _ = lin(keys[5], Dbc + Dwc, 1, bias=False)      # lp_model: Linear(Dbc+Dwc, 1, bias=False)
    p["lp_w_bc"] = wlp[:Dbc]                             # (Dbc, 1) acts on BC part of cat((BC, US), 1)
    p["lp_w_us"] = wlp[Dbc:]                             # (Dwc, 1) acts on US part
    return p


# ----------------------------------------------------------------------------
# NCP.forward == Encoder.forward : one jit, ONE pallas_call, weights folded on the fly
# ----------------------------------------------------------------------------
@jax.jit
def ncp_forward(params, data, key):
    B, N, F = data.shape
    H = params["wc_w1"].shape[1]
    assert N + 1 < _CAND_LANES, "candidate lane window too small for n_samples"

    # Fused first layers of the wc/us encoders.
    w1 = jnp.concatenate([params["wc_w1"], params["us_w1"]], axis=1)          # (F, 2H)
    b1 = jnp.concatenate([params["wc_b1"], params["us_b1"]]).reshape(1, 2 * H)
    alpha = jnp.concatenate([jnp.broadcast_to(params["wc_a"], (H,)),
                             jnp.broadcast_to(params["us_a"], (H,))]).reshape(1, 2 * H)

    # Linearity collapse of bc_model / lp_model into the encoder second layers:
    #   q_i = wc_i @ (Wbc @ vbc),  u_i = us_i @ vus,  c = bbc . vbc
    wq = params["bc_w"] @ params["lp_w_bc"]                                   # (Dwc, 1)
    w2q = params["wc_w2"] @ wq                                                # (H, 1)
    w2u = params["us_w2"] @ params["lp_w_us"]                                 # (H, 1)
    b2q = params["wc_b2"] @ wq                                                # (1,)
    b2u = params["us_b2"] @ params["lp_w_us"]                                 # (1,)
    c = (params["bc_b"] @ params["lp_w_bc"]).reshape(1, 1)                    # (1, 1)

    P = _CAND_LANES                       # lane-dense projection slab (cols 2.. are zero)
    w2p = jnp.zeros((2 * H, P), jnp.float32)
    w2p = w2p.at[:H, 0:1].set(w2q)
    w2p = w2p.at[H:, 1:2].set(w2u)
    b2p = jnp.zeros((1, P), jnp.float32)
    b2p = b2p.at[0, 0].set(b2q[0])
    b2p = b2p.at[0, 1].set(b2u[0])

    # Sample-major rows (row = i*B + b) so the loop slices q/u with static offsets.
    # Only the tiny raw input is re-laid-out; no activation-sized transpose remains.
    x = data.transpose(1, 0, 2).reshape(N * B, F).astype(jnp.float32)

    # All Gumbel noise for every step, drawn once up front (also avoids in-kernel PRNG).
    gumbel = jax.random.gumbel(key, (N, B, _CAND_LANES), jnp.float32)

    topics = ncp_pallas(x, w1, b1, alpha, w2p, b2p, c, gumbel)
    return topics[0]                      # (N,) int32


if __name__ == "__main__":
    key = jax.random.PRNGKey(0)
    kp, kd, kg = jax.random.split(key, 3)

    B, N, F = 2, 8, 8                     # batch=2, n_samples=8, n_features=8
    params = init_params(kp, F, H=32, Dwc=32, Dbc=64)
    data = jax.random.normal(kd, (B, N, F), jnp.float32)

    topics = ncp_forward(params, data, kg)
    jax.block_until_ready(topics)
    assert topics.shape == (N,) and topics.dtype == jnp.int32
    assert int(topics[0]) == 0 and int(topics[1]) == 0
    print("KERNEL_OK")
</pallas_src>

<mosaic_0001>
module attributes {stable_mosaic.version = 11 : i64} {
  func.func @_ncp_kernel(%arg0: memref<16x8xf32, #tpu.memory_space<vmem>>, %arg1: memref<8x64xf32, #tpu.memory_space<vmem>>, %arg2: memref<1x64xf32, #tpu.memory_space<vmem>>, %arg3: memref<1x64xf32, #tpu.memory_space<vmem>>, %arg4: memref<64x128xf32, #tpu.memory_space<vmem>>, %arg5: memref<1x128xf32, #tpu.memory_space<vmem>>, %arg6: memref<1x1xf32, #tpu.memory_space<vmem>>, %arg7: memref<8x2x128xf32, #tpu.memory_space<vmem>>, %arg8: memref<1x8xi32, #tpu.memory_space<vmem>>) attributes {dimension_semantics = [], scalar_prefetch = 0 : i64, scratch_operands = 0 : i64, tpu.core_type = #tpu.core_type<tc>} {
    %c0 = arith.constant 0 : index
    %c0_0 = arith.constant 0 : index
    %0 = vector.load %arg0[%c0, %c0_0] : memref<16x8xf32, #tpu.memory_space<vmem>>, vector<16x8xf32>
    %c0_1 = arith.constant 0 : index
    %c0_2 = arith.constant 0 : index
    %1 = vector.load %arg1[%c0_1, %c0_2] : memref<8x64xf32, #tpu.memory_space<vmem>>, vector<8x64xf32>
    %cst = arith.constant dense<0.000000e+00> : vector<16x64xf32>
    %2 = tpu.matmul %0, %1, %cst {dimension_numbers = #tpu.dot_dimension_numbers<[1], [0], [0], [1], [0, 0, 1, 1], [], []>} : vector<16x8xf32>, vector<8x64xf32>, vector<16x64xf32> -> vector<16x64xf32>
    %c0_3 = arith.constant 0 : index
    %c0_4 = arith.constant 0 : index
    %3 = vector.load %arg2[%c0_3, %c0_4] : memref<1x64xf32, #tpu.memory_space<vmem>>, vector<1x64xf32>
    %4 = vector.broadcast %3 : vector<1x64xf32> to vector<16x64xf32>
    %5 = arith.addf %2, %4 : vector<16x64xf32>
    %cst_5 = arith.constant 0.000000e+00 : f32
    %6 = vector.broadcast %cst_5 : f32 to vector<16x64xf32>
    %7 = arith.cmpf ogt, %5, %6 : vector<16x64xf32>
    %c0_6 = arith.constant 0 : index
    %c0_7 = arith.constant 0 : index
    %8 = vector.load %arg3[%c0_6, %c0_7] : memref<1x64xf32, #tpu.memory_space<vmem>>, vector<1x64xf32>
    %9 = vector.broadcast %8 : vector<1x64xf32> to vector<16x64xf32>
    %10 = arith.mulf %9, %5 : vector<16x64xf32>
    %11 = arith.select %7, %5, %10 : vector<16x64xi1>, vector<16x64xf32>
    %c0_8 = arith.constant 0 : index
    %c0_9 = arith.constant 0 : index
    %12 = vector.load %arg4[%c0_8, %c0_9] : memref<64x128xf32, #tpu.memory_space<vmem>>, vector<64x128xf32>
    %cst_10 = arith.constant dense<0.000000e+00> : vector<16x128xf32>
    %13 = tpu.matmul %11, %12, %cst_10 {dimension_numbers = #tpu.dot_dimension_numbers<[1], [0], [0], [1], [0, 0, 1, 1], [], []>} : vector<16x64xf32>, vector<64x128xf32>, vector<16x128xf32> -> vector<16x128xf32>
    %c0_11 = arith.constant 0 : index
    %c0_12 = arith.constant 0 : index
    %14 = vector.load %arg5[%c0_11, %c0_12] : memref<1x128xf32, #tpu.memory_space<vmem>>, vector<1x128xf32>
    %15 = vector.broadcast %14 : vector<1x128xf32> to vector<16x128xf32>
    %16 = arith.addf %13, %15 : vector<16x128xf32>
    %17 = vector.extract_strided_slice %16 {offsets = [0, 0], sizes = [16, 1], strides = [1, 1]} : vector<16x128xf32> to vector<16x1xf32>
    %18 = vector.extract_strided_slice %16 {offsets = [0, 1], sizes = [16, 1], strides = [1, 1]} : vector<16x128xf32> to vector<16x1xf32>
    %c0_13 = arith.constant 0 : index
    %c0_14 = arith.constant 0 : index
    %19 = vector.load %arg6[%c0_13, %c0_14] : memref<1x1xf32, #tpu.memory_space<vmem>>, vector<1x1xf32>
    %20 = tpu.iota {dimensions = array<i32: 1>} : vector<2x128xi32>
    %21 = arith.sitofp %20 : vector<2x128xi32> to vector<2x128xf32>
    %22 = tpu.iota {dimensions = array<i32: 1>} : vector<1x128xi32>
    %23 = arith.sitofp %22 : vector<1x128xi32> to vector<1x128xf32>
    %24 = tpu.iota {dimensions = array<i32: 1>} : vector<1x8xi32>
    %25 = arith.sitofp %24 : vector<1x8xi32> to vector<1x8xf32>
    %26 = vector.extract_strided_slice %17 {offsets = [0, 0], sizes = [2, 1], strides = [1, 1]} : vector<16x1xf32> to vector<2x1xf32>
    %cst_15 = arith.constant 0.000000e+00 : f32
    %27 = vector.broadcast %cst_15 : f32 to vector<2x1xf32>
    %28 = vector.extract_strided_slice %18 {offsets = [4, 0], sizes = [2, 1], strides = [1, 1]} : vector<16x1xf32> to vector<2x1xf32>
    %29 = arith.addf %27, %28 : vector<2x1xf32>
    %30 = vector.extract_strided_slice %18 {offsets = [6, 0], sizes = [2, 1], strides = [1, 1]} : vector<16x1xf32> to vector<2x1xf32>
    %31 = arith.addf %29, %30 : vector<2x1xf32>
    %32 = vector.extract_strided_slice %18 {offsets = [8, 0], sizes = [2, 1], strides = [1, 1]} : vector<16x1xf32> to vector<2x1xf32>
    %33 = arith.addf %31, %32 : vector<2x1xf32>
    %34 = vector.extract_strided_slice %18 {offsets = [10, 0], sizes = [2, 1], strides = [1, 1]} : vector<16x1xf32> to vector<2x1xf32>
    %35 = arith.addf %33, %34 : vector<2x1xf32>
    %36 = vector.extract_strided_slice %18 {offsets = [12, 0], sizes = [2, 1], strides = [1, 1]} : vector<16x1xf32> to vector<2x1xf32>
    %37 = arith.addf %35, %36 : vector<2x1xf32>
    %38 = vector.extract_strided_slice %18 {offsets = [14, 0], sizes = [2, 1], strides = [1, 1]} : vector<16x1xf32> to vector<2x1xf32>
    %39 = arith.addf %37, %38 : vector<2x1xf32>
    %cst_16 = arith.constant 1.000000e+00 : f32
    %40 = vector.broadcast %cst_16 : f32 to vector<1x1xf32>
    %cst_17 = arith.constant 0.000000e+00 : f32
    %41 = vector.broadcast %cst_17 : f32 to vector<1x1xf32>
    %cst_18 = arith.constant 0.000000e+00 : f32
    %42 = vector.broadcast %cst_18 : f32 to vector<1x8xf32>
    %43 = arith.addf %40, %41 : vector<1x1xf32>
    %44 = vector.extract_strided_slice %17 {offsets = [2, 0], sizes = [2, 1], strides = [1, 1]} : vector<16x1xf32> to vector<2x1xf32>
    %45 = arith.addf %26, %44 : vector<2x1xf32>
    %46 = vector.extract_strided_slice %18 {offsets = [4, 0], sizes = [2, 1], strides = [1, 1]} : vector<16x1xf32> to vector<2x1xf32>
    %47 = arith.subf %39, %46 : vector<2x1xf32>
    %48 = vector.extract_strided_slice %17 {offsets = [4, 0], sizes = [2, 1], strides = [1, 1]} : vector<16x1xf32> to vector<2x1xf32>
    %49 = arith.addf %45, %48 : vector<2x1xf32>
    %50 = arith.addf %49, %47 : vector<2x1xf32>
    %51 = arith.mulf %43, %19 : vector<1x1xf32>
    %52 = vector.broadcast %51 : vector<1x1xf32> to vector<2x1xf32>
    %53 = arith.addf %50, %52 : vector<2x1xf32>
    %54 = vector.broadcast %43 : vector<1x1xf32> to vector<2x128xf32>
    %55 = arith.cmpf olt, %21, %54 : vector<2x128xf32>
    %56 = vector.broadcast %43 : vector<1x1xf32> to vector<2x128xf32>
    %57 = arith.cmpf oeq, %21, %56 : vector<2x128xf32>
    %58 = vector.broadcast %19 : vector<1x1xf32> to vector<2x1xf32>
    %59 = arith.addf %53, %58 : vector<2x1xf32>
    %cst_19 = arith.constant -1.000000e+30 : f32
    %60 = vector.shape_cast %59 : vector<2x1xf32> to vector<2x1xf32>
    %61 = vector.broadcast %60 : vector<2x1xf32> to vector<2x128xf32>
    %62 = vector.broadcast %cst_19 : f32 to vector<2x128xf32>
    %63 = arith.select %57, %61, %62 : vector<2x128xi1>, vector<2x128xf32>
    %64 = vector.shape_cast %53 : vector<2x1xf32> to vector<2x1xf32>
    %65 = vector.broadcast %64 : vector<2x1xf32> to vector<2x128xf32>
    %66 = arith.select %55, %65, %63 : vector<2x128xi1>, vector<2x128xf32>
    %c2 = arith.constant 2 : index
    %c0_20 = arith.constant 0 : index
    %c0_21 = arith.constant 0 : index
    %67 = vector.load %arg7[%c2, %c0_20, %c0_21] : memref<8x2x128xf32, #tpu.memory_space<vmem>>, vector<1x2x128xf32>
    %68 = vector.shape_cast %67 : vector<1x2x128xf32> to vector<2x128xf32>
    %69 = arith.addf %66, %68 : vector<2x128xf32>
    %cst_22 = arith.constant dense<0xFF800000> : vector<2xf32>
    %70 = vector.multi_reduction <maximumf>, %69, %cst_22 [1] : vector<2x128xf32> to vector<2xf32>
    %71 = vector.shape_cast %70 : vector<2xf32> to vector<2x1xf32>
    %72 = vector.broadcast %71 : vector<2x1xf32> to vector<2x128xf32>
    %73 = arith.cmpf oeq, %69, %72 : vector<2x128xf32>
    %cst_23 = arith.constant 1.280000e+02 : f32
    %74 = vector.broadcast %cst_23 : f32 to vector<2x128xf32>
    %75 = arith.select %73, %21, %74 : vector<2x128xi1>, vector<2x128xf32>
    %cst_24 = arith.constant dense<0x7F800000> : vector<2xf32>
    %76 = vector.multi_reduction <minimumf>, %75, %cst_24 [1] : vector<2x128xf32> to vector<2xf32>
    %77 = vector.shape_cast %76 : vector<2xf32> to vector<2x1xf32>
    %78 = vector.broadcast %77 : vector<2x1xf32> to vector<2x128xf32>
    %79 = arith.cmpf oeq, %78, %21 : vector<2x128xf32>
    %80 = arith.extui %79 : vector<2x128xi1> to vector<2x128xi32>
    %81 = arith.sitofp %80 : vector<2x128xi32> to vector<2x128xf32>
    %cst_25 = arith.constant dense<0.000000e+00> : vector<128xf32>
    %82 = vector.multi_reduction <add>, %81, %cst_25 [0] : vector<2x128xf32> to vector<128xf32>
    %83 = vector.shape_cast %82 : vector<128xf32> to vector<1x128xf32>
    %cst_26 = arith.constant dense<0xFF800000> : vector<1xf32>
    %84 = vector.multi_reduction <maximumf>, %83, %cst_26 [1] : vector<1x128xf32> to vector<1xf32>
    %85 = vector.shape_cast %84 : vector<1xf32> to vector<1x1xf32>
    %86 = vector.broadcast %85 : vector<1x1xf32> to vector<1x128xf32>
    %87 = arith.cmpf oeq, %83, %86 : vector<1x128xf32>
    %cst_27 = arith.constant 1.280000e+02 : f32
    %88 = vector.broadcast %cst_27 : f32 to vector<1x128xf32>
    %89 = arith.select %87, %23, %88 : vector<1x128xi1>, vector<1x128xf32>
    %cst_28 = arith.constant dense<0x7F800000> : vector<1xf32>
    %90 = vector.multi_reduction <minimumf>, %89, %cst_28 [1] : vector<1x128xf32> to vector<1xf32>
    %91 = vector.shape_cast %90 : vector<1xf32> to vector<1x1xf32>
    %cst_29 = arith.constant 2.000000e+00 : f32
    %92 = vector.broadcast %cst_29 : f32 to vector<1x8xf32>
    %93 = arith.cmpf oeq, %25, %92 : vector<1x8xf32>
    %94 = vector.shape_cast %91 : vector<1x1xf32> to vector<1x1xf32>
    %95 = vector.broadcast %94 : vector<1x1xf32> to vector<1x8xf32>
    %96 = arith.select %93, %95, %42 : vector<1x8xi1>, vector<1x8xf32>
    %97 = arith.cmpf oeq, %91, %43 : vector<1x1xf32>
    %98 = arith.extui %97 : vector<1x1xi1> to vector<1x1xi32>
    %99 = arith.sitofp %98 : vector<1x1xi32> to vector<1x1xf32>
    %100 = arith.addf %43, %99 : vector<1x1xf32>
    %101 = vector.extract_strided_slice %17 {offsets = [4, 0], sizes = [2, 1], strides = [1, 1]} : vector<16x1xf32> to vector<2x1xf32>
    %102 = arith.addf %45, %101 : vector<2x1xf32>
    %103 = vector.extract_strided_slice %18 {offsets = [6, 0], sizes = [2, 1], strides = [1, 1]} : vector<16x1xf32> to vector<2x1xf32>
    %104 = arith.subf %47, %103 : vector<2x1xf32>
    %105 = vector.extract_strided_slice %17 {offsets = [6, 0], sizes = [2, 1], strides = [1, 1]} : vector<16x1xf32> to vector<2x1xf32>
    %106 = arith.addf %102, %105 : vector<2x1xf32>
    %107 = arith.addf %106, %104 : vector<2x1xf32>
    %108 = arith.mulf %100, %19 : vector<1x1xf32>
    %109 = vector.broadcast %108 : vector<1x1xf32> to vector<2x1xf32>
    %110 = arith.addf %107, %109 : vector<2x1xf32>
    %111 = vector.broadcast %100 : vector<1x1xf32> to vector<2x128xf32>
    %112 = arith.cmpf olt, %21, %111 : vector<2x128xf32>
    %113 = vector.broadcast %100 : vector<1x1xf32> to vector<2x128xf32>
    %114 = arith.cmpf oeq, %21, %113 : vector<2x128xf32>
    %115 = vector.broadcast %19 : vector<1x1xf32> to vector<2x1xf32>
    %116 = arith.addf %110, %115 : vector<2x1xf32>
    %cst_30 = arith.constant -1.000000e+30 : f32
    %117 = vector.shape_cast %116 : vector<2x1xf32> to vector<2x1xf32>
    %118 = vector.broadcast %117 : vector<2x1xf32> to vector<2x128xf32>
    %119 = vector.broadcast %cst_30 : f32 to vector<2x128xf32>
    %120 = arith.select %114, %118, %119 : vector<2x128xi1>, vector<2x128xf32>
    %121 = vector.shape_cast %110 : vector<2x1xf32> to vector<2x1xf32>
    %122 = vector.broadcast %121 : vector<2x1xf32> to vector<2x128xf32>
    %123 = arith.select %112, %122, %120 : vector<2x128xi1>, vector<2x128xf32>
    %c3 = arith.constant 3 : index
    %c0_31 = arith.constant 0 : index
    %c0_32 = arith.constant 0 : index
    %124 = vector.load %arg7[%c3, %c0_31, %c0_32] : memref<8x2x128xf32, #tpu.memory_space<vmem>>, vector<1x2x128xf32>
    %125 = vector.shape_cast %124 : vector<1x2x128xf32> to vector<2x128xf32>
    %126 = arith.addf %123, %125 : vector<2x128xf32>
    %cst_33 = arith.constant dense<0xFF800000> : vector<2xf32>
    %127 = vector.multi_reduction <maximumf>, %126, %cst_33 [1] : vector<2x128xf32> to vector<2xf32>
    %128 = vector.shape_cast %127 : vector<2xf32> to vector<2x1xf32>
    %129 = vector.broadcast %128 : vector<2x1xf32> to vector<2x128xf32>
    %130 = arith.cmpf oeq, %126, %129 : vector<2x128xf32>
    %cst_34 = arith.constant 1.280000e+02 : f32
    %131 = vector.broadcast %cst_34 : f32 to vector<2x128xf32>
    %132 = arith.select %130, %21, %131 : vector<2x128xi1>, vector<2x128xf32>
    %cst_35 = arith.constant dense<0x7F800000> : vector<2xf32>
    %133 = vector.multi_reduction <minimumf>, %132, %cst_35 [1] : vector<2x128xf32> to vector<2xf32>
    %134 = vector.shape_cast %133 : vector<2xf32> to vector<2x1xf32>
    %135 = vector.broadcast %134 : vector<2x1xf32> to vector<2x128xf32>
    %136 = arith.cmpf oeq, %135, %21 : vector<2x128xf32>
    %137 = arith.extui %136 : vector<2x128xi1> to vector<2x128xi32>
    %138 = arith.sitofp %137 : vector<2x128xi32> to vector<2x128xf32>
    %cst_36 = arith.constant dense<0.000000e+00> : vector<128xf32>
    %139 = vector.multi_reduction <add>, %138, %cst_36 [0] : vector<2x128xf32> to vector<128xf32>
    %140 = vector.shape_cast %139 : vector<128xf32> to vector<1x128xf32>
    %cst_37 = arith.constant dense<0xFF800000> : vector<1xf32>
    %141 = vector.multi_reduction <maximumf>, %140, %cst_37 [1] : vector<1x128xf32> to vector<1xf32>
    %142 = vector.shape_cast %141 : vector<1xf32> to vector<1x1xf32>
    %143 = vector.broadcast %142 : vector<1x1xf32> to vector<1x128xf32>
    %144 = arith.cmpf oeq, %140, %143 : vector<1x128xf32>
    %cst_38 = arith.constant 1.280000e+02 : f32
    %145 = vector.broadcast %cst_38 : f32 to vector<1x128xf32>
    %146 = arith.select %144, %23, %145 : vector<1x128xi1>, vector<1x128xf32>
    %cst_39 = arith.constant dense<0x7F800000> : vector<1xf32>
    %147 = vector.multi_reduction <minimumf>, %146, %cst_39 [1] : vector<1x128xf32> to vector<1xf32>
    %148 = vector.shape_cast %147 : vector<1xf32> to vector<1x1xf32>
    %cst_40 = arith.constant 3.000000e+00 : f32
    %149 = vector.broadcast %cst_40 : f32 to vector<1x8xf32>
    %150 = arith.cmpf oeq, %25, %149 : vector<1x8xf32>
    %151 = vector.shape_cast %148 : vector<1x1xf32> to vector<1x1xf32>
    %152 = vector.broadcast %151 : vector<1x1xf32> to vector<1x8xf32>
    %153 = arith.select %150, %152, %96 : vector<1x8xi1>, vector<1x8xf32>
    %154 = arith.cmpf oeq, %148, %100 : vector<1x1xf32>
    %155 = arith.extui %154 : vector<1x1xi1> to vector<1x1xi32>
    %156 = arith.sitofp %155 : vector<1x1xi32> to vector<1x1xf32>
    %157 = arith.addf %100, %156 : vector<1x1xf32>
    %158 = vector.extract_strided_slice %17 {offsets = [6, 0], sizes = [2, 1], strides = [1, 1]} : vector<16x1xf32> to vector<2x1xf32>
    %159 = arith.addf %102, %158 : vector<2x1xf32>
    %160 = vector.extract_strided_slice %18 {offsets = [8, 0], sizes = [2, 1], strides = [1, 1]} : vector<16x1xf32> to vector<2x1xf32>
    %161 = arith.subf %104, %160 : vector<2x1xf32>
    %162 = vector.extract_strided_slice %17 {offsets = [8, 0], sizes = [2, 1], strides = [1, 1]} : vector<16x1xf32> to vector<2x1xf32>
    %163 = arith.addf %159, %162 : vector<2x1xf32>
    %164 = arith.addf %163, %161 : vector<2x1xf32>
    %165 = arith.mulf %157, %19 : vector<1x1xf32>
    %166 = vector.broadcast %165 : vector<1x1xf32> to vector<2x1xf32>
    %167 = arith.addf %164, %166 : vector<2x1xf32>
    %168 = vector.broadcast %157 : vector<1x1xf32> to vector<2x128xf32>
    %169 = arith.cmpf olt, %21, %168 : vector<2x128xf32>
    %170 = vector.broadcast %157 : vector<1x1xf32> to vector<2x128xf32>
    %171 = arith.cmpf oeq, %21, %170 : vector<2x128xf32>
    %172 = vector.broadcast %19 : vector<1x1xf32> to vector<2x1xf32>
    %173 = arith.addf %167, %172 : vector<2x1xf32>
    %cst_41 = arith.constant -1.000000e+30 : f32
    %174 = vector.shape_cast %173 : vector<2x1xf32> to vector<2x1xf32>
    %175 = vector.broadcast %174 : vector<2x1xf32> to vector<2x128xf32>
    %176 = vector.broadcast %cst_41 : f32 to vector<2x128xf32>
    %177 = arith.select %171, %175, %176 : vector<2x128xi1>, vector<2x128xf32>
    %178 = vector.shape_cast %167 : vector<2x1xf32> to vector<2x1xf32>
    %179 = vector.broadcast %178 : vector<2x1xf32> to vector<2x128xf32>
    %180 = arith.select %169, %179, %177 : vector<2x128xi1>, vector<2x128xf32>
    %c4 = arith.constant 4 : index
    %c0_42 = arith.constant 0 : index
    %c0_43 = arith.constant 0 : index
    %181 = vector.load %arg7[%c4, %c0_42, %c0_43] : memref<8x2x128xf32, #tpu.memory_space<vmem>>, vector<1x2x128xf32>
    %182 = vector.shape_cast %181 : vector<1x2x128xf32> to vector<2x128xf32>
    %183 = arith.addf %180, %182 : vector<2x128xf32>
    %cst_44 = arith.constant dense<0xFF800000> : vector<2xf32>
    %184 = vector.multi_reduction <maximumf>, %183, %cst_44 [1] : vector<2x128xf32> to vector<2xf32>
    %185 = vector.shape_cast %184 : vector<2xf32> to vector<2x1xf32>
    %186 = vector.broadcast %185 : vector<2x1xf32> to vector<2x128xf32>
    %187 = arith.cmpf oeq, %183, %186 : vector<2x128xf32>
    %cst_45 = arith.constant 1.280000e+02 : f32
    %188 = vector.broadcast %cst_45 : f32 to vector<2x128xf32>
    %189 = arith.select %187, %21, %188 : vector<2x128xi1>, vector<2x128xf32>
    %cst_46 = arith.constant dense<0x7F800000> : vector<2xf32>
    %190 = vector.multi_reduction <minimumf>, %189, %cst_46 [1] : vector<2x128xf32> to vector<2xf32>
    %191 = vector.shape_cast %190 : vector<2xf32> to vector<2x1xf32>
    %192 = vector.broadcast %191 : vector<2x1xf32> to vector<2x128xf32>
    %193 = arith.cmpf oeq, %192, %21 : vector<2x128xf32>
    %194 = arith.extui %193 : vector<2x128xi1> to vector<2x128xi32>
    %195 = arith.sitofp %194 : vector<2x128xi32> to vector<2x128xf32>
    %cst_47 = arith.constant dense<0.000000e+00> : vector<128xf32>
    %196 = vector.multi_reduction <add>, %195, %cst_47 [0] : vector<2x128xf32> to vector<128xf32>
    %197 = vector.shape_cast %196 : vector<128xf32> to vector<1x128xf32>
    %cst_48 = arith.constant dense<0xFF800000> : vector<1xf32>
    %198 = vector.multi_reduction <maximumf>, %197, %cst_48 [1] : vector<1x128xf32> to vector<1xf32>
    %199 = vector.shape_cast %198 : vector<1xf32> to vector<1x1xf32>
    %200 = vector.broadcast %199 : vector<1x1xf32> to vector<1x128xf32>
    %201 = arith.cmpf oeq, %197, %200 : vector<1x128xf32>
    %cst_49 = arith.constant 1.280000e+02 : f32
    %202 = vector.broadcast %cst_49 : f32 to vector<1x128xf32>
    %203 = arith.select %201, %23, %202 : vector<1x128xi1>, vector<1x128xf32>
    %cst_50 = arith.constant dense<0x7F800000> : vector<1xf32>
    %204 = vector.multi_reduction <minimumf>, %203, %cst_50 [1] : vector<1x128xf32> to vector<1xf32>
    %205 = vector.shape_cast %204 : vector<1xf32> to vector<1x1xf32>
    %cst_51 = arith.constant 4.000000e+00 : f32
    %206 = vector.broadcast %cst_51 : f32 to vector<1x8xf32>
    %207 = arith.cmpf oeq, %25, %206 : vector<1x8xf32>
    %208 = vector.shape_cast %205 : vector<1x1xf32> to vector<1x1xf32>
    %209 = vector.broadcast %208 : vector<1x1xf32> to vector<1x8xf32>
    %210 = arith.select %207, %209, %153 : vector<1x8xi1>, vector<1x8xf32>
    %211 = arith.cmpf oeq, %205, %157 : vector<1x1xf32>
    %212 = arith.extui %211 : vector<1x1xi1> to vector<1x1xi32>
    %213 = arith.sitofp %212 : vector<1x1xi32> to vector<1x1xf32>
    %214 = arith.addf %157, %213 : vector<1x1xf32>
    %215 = vector.extract_strided_slice %17 {offsets = [8, 0], sizes = [2, 1], strides = [1, 1]} : vector<16x1xf32> to vector<2x1xf32>
    %216 = arith.addf %159, %215 : vector<2x1xf32>
    %217 = vector.extract_strided_slice %18 {offsets = [10, 0], sizes = [2, 1], strides = [1, 1]} : vector<16x1xf32> to vector<2x1xf32>
    %218 = arith.subf %161, %217 : vector<2x1xf32>
    %219 = vector.extract_strided_slice %17 {offsets = [10, 0], sizes = [2, 1], strides = [1, 1]} : vector<16x1xf32> to vector<2x1xf32>
    %220 = arith.addf %216, %219 : vector<2x1xf32>
    %221 = arith.addf %220, %218 : vector<2x1xf32>
    %222 = arith.mulf %214, %19 : vector<1x1xf32>
    %223 = vector.broadcast %222 : vector<1x1xf32> to vector<2x1xf32>
    %224 = arith.addf %221, %223 : vector<2x1xf32>
    %225 = vector.broadcast %214 : vector<1x1xf32> to vector<2x128xf32>
    %226 = arith.cmpf olt, %21, %225 : vector<2x128xf32>
    %227 = vector.broadcast %214 : vector<1x1xf32> to vector<2x128xf32>
    %228 = arith.cmpf oeq, %21, %227 : vector<2x128xf32>
    %229 = vector.broadcast %19 : vector<1x1xf32> to vector<2x1xf32>
    %230 = arith.addf %224, %229 : vector<2x1xf32>
    %cst_52 = arith.constant -1.000000e+30 : f32
    %231 = vector.shape_cast %230 : vector<2x1xf32> to vector<2x1xf32>
    %232 = vector.broadcast %231 : vector<2x1xf32> to vector<2x128xf32>
    %233 = vector.broadcast %cst_52 : f32 to vector<2x128xf32>
    %234 = arith.select %228, %232, %233 : vector<2x128xi1>, vector<2x128xf32>
    %235 = vector.shape_cast %224 : vector<2x1xf32> to vector<2x1xf32>
    %236 = vector.broadcast %235 : vector<2x1xf32> to vector<2x128xf32>
    %237 = arith.select %226, %236, %234 : vector<2x128xi1>, vector<2x128xf32>
    %c5 = arith.constant 5 : index
    %c0_53 = arith.constant 0 : index
    %c0_54 = arith.constant 0 : index
    %238 = vector.load %arg7[%c5, %c0_53, %c0_54] : memref<8x2x128xf32, #tpu.memory_space<vmem>>, vector<1x2x128xf32>
    %239 = vector.shape_cast %238 : vector<1x2x128xf32> to vector<2x128xf32>
    %240 = arith.addf %237, %239 : vector<2x128xf32>
    %cst_55 = arith.constant dense<0xFF800000> : vector<2xf32>
    %241 = vector.multi_reduction <maximumf>, %240, %cst_55 [1] : vector<2x128xf32> to vector<2xf32>
    %242 = vector.shape_cast %241 : vector<2xf32> to vector<2x1xf32>
    %243 = vector.broadcast %242 : vector<2x1xf32> to vector<2x128xf32>
    %244 = arith.cmpf oeq, %240, %243 : vector<2x128xf32>
    %cst_56 = arith.constant 1.280000e+02 : f32
    %245 = vector.broadcast %cst_56 : f32 to vector<2x128xf32>
    %246 = arith.select %244, %21, %245 : vector<2x128xi1>, vector<2x128xf32>
    %cst_57 = arith.constant dense<0x7F800000> : vector<2xf32>
    %247 = vector.multi_reduction <minimumf>, %246, %cst_57 [1] : vector<2x128xf32> to vector<2xf32>
    %248 = vector.shape_cast %247 : vector<2xf32> to vector<2x1xf32>
    %249 = vector.broadcast %248 : vector<2x1xf32> to vector<2x128xf32>
    %250 = arith.cmpf oeq, %249, %21 : vector<2x128xf32>
    %251 = arith.extui %250 : vector<2x128xi1> to vector<2x128xi32>
    %252 = arith.sitofp %251 : vector<2x128xi32> to vector<2x128xf32>
    %cst_58 = arith.constant dense<0.000000e+00> : vector<128xf32>
    %253 = vector.multi_reduction <add>, %252, %cst_58 [0] : vector<2x128xf32> to vector<128xf32>
    %254 = vector.shape_cast %253 : vector<128xf32> to vector<1x128xf32>
    %cst_59 = arith.constant dense<0xFF800000> : vector<1xf32>
    %255 = vector.multi_reduction <maximumf>, %254, %cst_59 [1] : vector<1x128xf32> to vector<1xf32>
    %256 = vector.shape_cast %255 : vector<1xf32> to vector<1x1xf32>
    %257 = vector.broadcast %256 : vector<1x1xf32> to vector<1x128xf32>
    %258 = arith.cmpf oeq, %254, %257 : vector<1x128xf32>
    %cst_60 = arith.constant 1.280000e+02 : f32
    %259 = vector.broadcast %cst_60 : f32 to vector<1x128xf32>
    %260 = arith.select %258, %23, %259 : vector<1x128xi1>, vector<1x128xf32>
    %cst_61 = arith.constant dense<0x7F800000> : vector<1xf32>
    %261 = vector.multi_reduction <minimumf>, %260, %cst_61 [1] : vector<1x128xf32> to vector<1xf32>
    %262 = vector.shape_cast %261 : vector<1xf32> to vector<1x1xf32>
    %cst_62 = arith.constant 5.000000e+00 : f32
    %263 = vector.broadcast %cst_62 : f32 to vector<1x8xf32>
    %264 = arith.cmpf oeq, %25, %263 : vector<1x8xf32>
    %265 = vector.shape_cast %262 : vector<1x1xf32> to vector<1x1xf32>
    %266 = vector.broadcast %265 : vector<1x1xf32> to vector<1x8xf32>
    %267 = arith.select %264, %266, %210 : vector<1x8xi1>, vector<1x8xf32>
    %268 = arith.cmpf oeq, %262, %214 : vector<1x1xf32>
    %269 = arith.extui %268 : vector<1x1xi1> to vector<1x1xi32>
    %270 = arith.sitofp %269 : vector<1x1xi32> to vector<1x1xf32>
    %271 = arith.addf %214, %270 : vector<1x1xf32>
    %272 = vector.extract_strided_slice %17 {offsets = [10, 0], sizes = [2, 1], strides = [1, 1]} : vector<16x1xf32> to vector<2x1xf32>
    %273 = arith.addf %216, %272 : vector<2x1xf32>
    %274 = vector.extract_strided_slice %18 {offsets = [12, 0], sizes = [2, 1], strides = [1, 1]} : vector<16x1xf32> to vector<2x1xf32>
    %275 = arith.subf %218, %274 : vector<2x1xf32>
    %276 = vector.extract_strided_slice %17 {offsets = [12, 0], sizes = [2, 1], strides = [1, 1]} : vector<16x1xf32> to vector<2x1xf32>
    %277 = arith.addf %273, %276 : vector<2x1xf32>
    %278 = arith.addf %277, %275 : vector<2x1xf32>
    %279 = arith.mulf %271, %19 : vector<1x1xf32>
    %280 = vector.broadcast %279 : vector<1x1xf32> to vector<2x1xf32>
    %281 = arith.addf %278, %280 : vector<2x1xf32>
    %282 = vector.broadcast %271 : vector<1x1xf32> to vector<2x128xf32>
    %283 = arith.cmpf olt, %21, %282 : vector<2x128xf32>
    %284 = vector.broadcast %271 : vector<1x1xf32> to vector<2x128xf32>
    %285 = arith.cmpf oeq, %21, %284 : vector<2x128xf32>
    %286 = vector.broadcast %19 : vector<1x1xf32> to vector<2x1xf32>
    %287 = arith.addf %281, %286 : vector<2x1xf32>
    %cst_63 = arith.constant -1.000000e+30 : f32
    %288 = vector.shape_cast %287 : vector<2x1xf32> to vector<2x1xf32>
    %289 = vector.broadcast %288 : vector<2x1xf32> to vector<2x128xf32>
    %290 = vector.broadcast %cst_63 : f32 to vector<2x128xf32>
    %291 = arith.select %285, %289, %290 : vector<2x128xi1>, vector<2x128xf32>
    %292 = vector.shape_cast %281 : vector<2x1xf32> to vector<2x1xf32>
    %293 = vector.broadcast %292 : vector<2x1xf32> to vector<2x128xf32>
    %294 = arith.select %283, %293, %291 : vector<2x128xi1>, vector<2x128xf32>
    %c6 = arith.constant 6 : index
    %c0_64 = arith.constant 0 : index
    %c0_65 = arith.constant 0 : index
    %295 = vector.load %arg7[%c6, %c0_64, %c0_65] : memref<8x2x128xf32, #tpu.memory_space<vmem>>, vector<1x2x128xf32>
    %296 = vector.shape_cast %295 : vector<1x2x128xf32> to vector<2x128xf32>
    %297 = arith.addf %294, %296 : vector<2x128xf32>
    %cst_66 = arith.constant dense<0xFF800000> : vector<2xf32>
    %298 = vector.multi_reduction <maximumf>, %297, %cst_66 [1] : vector<2x128xf32> to vector<2xf32>
    %299 = vector.shape_cast %298 : vector<2xf32> to vector<2x1xf32>
    %300 = vector.broadcast %299 : vector<2x1xf32> to vector<2x128xf32>
    %301 = arith.cmpf oeq, %297, %300 : vector<2x128xf32>
    %cst_67 = arith.constant 1.280000e+02 : f32
    %302 = vector.broadcast %cst_67 : f32 to vector<2x128xf32>
    %303 = arith.select %301, %21, %302 : vector<2x128xi1>, vector<2x128xf32>
    %cst_68 = arith.constant dense<0x7F800000> : vector<2xf32>
    %304 = vector.multi_reduction <minimumf>, %303, %cst_68 [1] : vector<2x128xf32> to vector<2xf32>
    %305 = vector.shape_cast %304 : vector<2xf32> to vector<2x1xf32>
    %306 = vector.broadcast %305 : vector<2x1xf32> to vector<2x128xf32>
    %307 = arith.cmpf oeq, %306, %21 : vector<2x128xf32>
    %308 = arith.extui %307 : vector<2x128xi1> to vector<2x128xi32>
    %309 = arith.sitofp %308 : vector<2x128xi32> to vector<2x128xf32>
    %cst_69 = arith.constant dense<0.000000e+00> : vector<128xf32>
    %310 = vector.multi_reduction <add>, %309, %cst_69 [0] : vector<2x128xf32> to vector<128xf32>
    %311 = vector.shape_cast %310 : vector<128xf32> to vector<1x128xf32>
    %cst_70 = arith.constant dense<0xFF800000> : vector<1xf32>
    %312 = vector.multi_reduction <maximumf>, %311, %cst_70 [1] : vector<1x128xf32> to vector<1xf32>
    %313 = vector.shape_cast %312 : vector<1xf32> to vector<1x1xf32>
    %314 = vector.broadcast %313 : vector<1x1xf32> to vector<1x128xf32>
    %315 = arith.cmpf oeq, %311, %314 : vector<1x128xf32>
    %cst_71 = arith.constant 1.280000e+02 : f32
    %316 = vector.broadcast %cst_71 : f32 to vector<1x128xf32>
    %317 = arith.select %315, %23, %316 : vector<1x128xi1>, vector<1x128xf32>
    %cst_72 = arith.constant dense<0x7F800000> : vector<1xf32>
    %318 = vector.multi_reduction <minimumf>, %317, %cst_72 [1] : vector<1x128xf32> to vector<1xf32>
    %319 = vector.shape_cast %318 : vector<1xf32> to vector<1x1xf32>
    %cst_73 = arith.constant 6.000000e+00 : f32
    %320 = vector.broadcast %cst_73 : f32 to vector<1x8xf32>
    %321 = arith.cmpf oeq, %25, %320 : vector<1x8xf32>
    %322 = vector.shape_cast %319 : vector<1x1xf32> to vector<1x1xf32>
    %323 = vector.broadcast %322 : vector<1x1xf32> to vector<1x8xf32>
    %324 = arith.select %321, %323, %267 : vector<1x8xi1>, vector<1x8xf32>
    %325 = arith.cmpf oeq, %319, %271 : vector<1x1xf32>
    %326 = arith.extui %325 : vector<1x1xi1> to vector<1x1xi32>
    %327 = arith.sitofp %326 : vector<1x1xi32> to vector<1x1xf32>
    %328 = arith.addf %271, %327 : vector<1x1xf32>
    %329 = vector.extract_strided_slice %17 {offsets = [12, 0], sizes = [2, 1], strides = [1, 1]} : vector<16x1xf32> to vector<2x1xf32>
    %330 = arith.addf %273, %329 : vector<2x1xf32>
    %cst_74 = arith.constant 0.000000e+00 : f32
    %331 = vector.broadcast %cst_74 : f32 to vector<2x1xf32>
    %332 = vector.extract_strided_slice %17 {offsets = [14, 0], sizes = [2, 1], strides = [1, 1]} : vector<16x1xf32> to vector<2x1xf32>
    %333 = arith.addf %330, %332 : vector<2x1xf32>
    %334 = arith.addf %333, %331 : vector<2x1xf32>
    %335 = arith.mulf %328, %19 : vector<1x1xf32>
    %336 = vector.broadcast %335 : vector<1x1xf32> to vector<2x1xf32>
    %337 = arith.addf %334, %336 : vector<2x1xf32>
    %338 = vector.broadcast %328 : vector<1x1xf32> to vector<2x128xf32>
    %339 = arith.cmpf olt, %21, %338 : vector<2x128xf32>
    %340 = vector.broadcast %328 : vector<1x1xf32> to vector<2x128xf32>
    %341 = arith.cmpf oeq, %21, %340 : vector<2x128xf32>
    %342 = vector.broadcast %19 : vector<1x1xf32> to vector<2x1xf32>
    %343 = arith.addf %337, %342 : vector<2x1xf32>
    %cst_75 = arith.constant -1.000000e+30 : f32
    %344 = vector.shape_cast %343 : vector<2x1xf32> to vector<2x1xf32>
    %345 = vector.broadcast %344 : vector<2x1xf32> to vector<2x128xf32>
    %346 = vector.broadcast %cst_75 : f32 to vector<2x128xf32>
    %347 = arith.select %341, %345, %346 : vector<2x128xi1>, vector<2x128xf32>
    %348 = vector.shape_cast %337 : vector<2x1xf32> to vector<2x1xf32>
    %349 = vector.broadcast %348 : vector<2x1xf32> to vector<2x128xf32>
    %350 = arith.select %339, %349, %347 : vector<2x128xi1>, vector<2x128xf32>
    %c7 = arith.constant 7 : index
    %c0_76 = arith.constant 0 : index
    %c0_77 = arith.constant 0 : index
    %351 = vector.load %arg7[%c7, %c0_76, %c0_77] : memref<8x2x128xf32, #tpu.memory_space<vmem>>, vector<1x2x128xf32>
    %352 = vector.shape_cast %351 : vector<1x2x128xf32> to vector<2x128xf32>
    %353 = arith.addf %350, %352 : vector<2x128xf32>
    %cst_78 = arith.constant dense<0xFF800000> : vector<2xf32>
    %354 = vector.multi_reduction <maximumf>, %353, %cst_78 [1] : vector<2x128xf32> to vector<2xf32>
    %355 = vector.shape_cast %354 : vector<2xf32> to vector<2x1xf32>
    %356 = vector.broadcast %355 : vector<2x1xf32> to vector<2x128xf32>
    %357 = arith.cmpf oeq, %353, %356 : vector<2x128xf32>
    %cst_79 = arith.constant 1.280000e+02 : f32
    %358 = vector.broadcast %cst_79 : f32 to vector<2x128xf32>
    %359 = arith.select %357, %21, %358 : vector<2x128xi1>, vector<2x128xf32>
    %cst_80 = arith.constant dense<0x7F800000> : vector<2xf32>
    %360 = vector.multi_reduction <minimumf>, %359, %cst_80 [1] : vector<2x128xf32> to vector<2xf32>
    %361 = vector.shape_cast %360 : vector<2xf32> to vector<2x1xf32>
    %362 = vector.broadcast %361 : vector<2x1xf32> to vector<2x128xf32>
    %363 = arith.cmpf oeq, %362, %21 : vector<2x128xf32>
    %364 = arith.extui %363 : vector<2x128xi1> to vector<2x128xi32>
    %365 = arith.sitofp %364 : vector<2x128xi32> to vector<2x128xf32>
    %cst_81 = arith.constant dense<0.000000e+00> : vector<128xf32>
    %366 = vector.multi_reduction <add>, %365, %cst_81 [0] : vector<2x128xf32> to vector<128xf32>
    %367 = vector.shape_cast %366 : vector<128xf32> to vector<1x128xf32>
    %cst_82 = arith.constant dense<0xFF800000> : vector<1xf32>
    %368 = vector.multi_reduction <maximumf>, %367, %cst_82 [1] : vector<1x128xf32> to vector<1xf32>
    %369 = vector.shape_cast %368 : vector<1xf32> to vector<1x1xf32>
    %370 = vector.broadcast %369 : vector<1x1xf32> to vector<1x128xf32>
    %371 = arith.cmpf oeq, %367, %370 : vector<1x128xf32>
    %cst_83 = arith.constant 1.280000e+02 : f32
    %372 = vector.broadcast %cst_83 : f32 to vector<1x128xf32>
    %373 = arith.select %371, %23, %372 : vector<1x128xi1>, vector<1x128xf32>
    %cst_84 = arith.constant dense<0x7F800000> : vector<1xf32>
    %374 = vector.multi_reduction <minimumf>, %373, %cst_84 [1] : vector<1x128xf32> to vector<1xf32>
    %375 = vector.shape_cast %374 : vector<1xf32> to vector<1x1xf32>
    %cst_85 = arith.constant 7.000000e+00 : f32
    %376 = vector.broadcast %cst_85 : f32 to vector<1x8xf32>
    %377 = arith.cmpf oeq, %25, %376 : vector<1x8xf32>
    %378 = vector.shape_cast %375 : vector<1x1xf32> to vector<1x1xf32>
    %379 = vector.broadcast %378 : vector<1x1xf32> to vector<1x8xf32>
    %380 = arith.select %377, %379, %324 : vector<1x8xi1>, vector<1x8xf32>
    %381 = arith.fptosi %380 : vector<1x8xf32> to vector<1x8xi32>
    %c0_86 = arith.constant 0 : index
    %c0_87 = arith.constant 0 : index
    %382 = vector.load %arg8[%c0_86, %c0_87] : memref<1x8xi32, #tpu.memory_space<vmem>>, vector<1x8xi32>
    tpu.vector_store %arg8[%c0_86, %c0_87], %381 {strides = array<i32>} : memref<1x8xi32, #tpu.memory_space<vmem>>, vector<1x8xi32>,
    return
  }
}

</mosaic_0001>

<llo_original>
// kernel: ncp_forward.1
$region0: #{ncp_forward.1}
  #allocation0 [shape = 'u32[]', space=smem, size = 0x4, offset = 0x4, fixed_abs, tag = 'smem constant byte address 0x4 - core index']
  #allocation1 [shape = 'u32[144,128]{1,0:T(1,128)}', space=vmem, size = 0x12000, scoped, tag = 'internal scratch']
  #allocation2 [shape = 'f32[1,1]{1,0:T(1,128)S(1)}', space=vmem, size = 0x200, scoped, tag = 'scoped memory for ncp_forward.1']
  %s0 = inlined_call_operand.vmem [shape: f32[16,8], index: 0, kind: input, shape index: {}]
  %s1 = inlined_call_operand.vmem [shape: f32[8,64], index: 1, kind: input, shape index: {}]
  %s2 = inlined_call_operand.vmem [shape: f32[1,64], index: 2, kind: input, shape index: {}]
  %s3 = inlined_call_operand.vmem [shape: f32[1,64], index: 3, kind: input, shape index: {}]
  %s4 = inlined_call_operand.vmem [shape: f32[64,128], index: 4, kind: input, shape index: {}]
  %s5 = inlined_call_operand.vmem [shape: f32[1,128], index: 5, kind: input, shape index: {}]
  %s6 = inlined_call_operand.<no memory space> [shape: f32[1,1], index: 6, kind: input, shape index: {}]
  %s7 = inlined_call_operand.vmem [shape: f32[8,2,128], index: 7, kind: input, shape index: {}]
  %s8 = inlined_call_operand.hbm [shape: s32[1,8], index: 8, kind: output, shape index: {}]
  %s9 = sld [smem:[#allocation0]]
  $region42: #{ncp_forward.1} parent=0
    _
  %s11 = ssub.s32 1, %s9
  %s12 = scalar_select 0, %s11, %s9
  %v13 = vstv %s6
  %14 = vst [vmem:[#allocation2] sm:$0x1] %v13
  $region1: #{ncp_forward.1} parent=0
    #allocation3 [shape = 'u8[512]{0}', space=vmem, size = 0x400, scoped, tag = 'output window, operand 0, single buffered']
    #allocation4 [shape = 's32[1]{0}', space=sflag, size = 0x4, scoped, tag = 'scoped memory for ncp_forward.1']
    %15 = vsyncpa [#allocation4], 0
    // Predicated region
    $region2: #{ncp_forward.1} parent=1 // pred_check
      _
    $region3: #{ncp_forward.1} parent=1 // pred_check_branch
      %17 = sbr.rel (0) target = $region5
    $region4: #{ncp_forward.1} parent=1 // pred_region
      _
    $region5: #{ncp_forward.1} parent=1 // pred_fallthru
      _
    // Predicated region
    $region6: #{ncp_forward.1} parent=1 // pred_check
      _
    $region7: #{ncp_forward.1} parent=1 // pred_check_branch
      %19 = sbr.rel (0) target = $region9
    $region8: #{ncp_forward.1} parent=1 // pred_region
      _
    $region9: #{ncp_forward.1} parent=1 // pred_fallthru
      _
    // Predicated region
    $region10: #{ncp_forward.1} parent=1 // pred_check
      _
    $region11: #{ncp_forward.1} parent=1 // pred_check_branch
      %21 = sbr.rel (0) target = $region13
    $region12: #{ncp_forward.1} parent=1 // pred_region
      _
    $region13: #{ncp_forward.1} parent=1 // pred_fallthru
      _
    // Predicated region
    $region14: #{ncp_forward.1} parent=1 // pred_check
      _
    $region15: #{ncp_forward.1} parent=1 // pred_check_branch
      %23 = sbr.rel (0) target = $region17
    $region16: #{ncp_forward.1} parent=1 // pred_region
      _
    $region17: #{ncp_forward.1} parent=1 // pred_fallthru
      _
    // Predicated region
    $region18: #{ncp_forward.1} parent=1 // pred_check
      _
    $region19: #{ncp_forward.1} parent=1 // pred_check_branch
      %25 = sbr.rel (0) target = $region21
    $region20: #{ncp_forward.1} parent=1 // pred_region
      _
    $region21: #{ncp_forward.1} parent=1 // pred_fallthru
      _
    // Predicated region
    $region22: #{ncp_forward.1} parent=1 // pred_check
      _
    $region23: #{ncp_forward.1} parent=1 // pred_check_branch
      %27 = sbr.rel (0) target = $region25
    $region24: #{ncp_forward.1} parent=1 // pred_region
      _
    $region25: #{ncp_forward.1} parent=1 // pred_fallthru
      _
    // Predicated region
    $region26: #{ncp_forward.1} parent=1 // pred_check
      _
    $region27: #{ncp_forward.1} parent=1 // pred_check_branch
      %29 = sbr.rel (0) target = $region29
    $region28: #{ncp_forward.1} parent=1 // pred_region
      _
    $region29: #{ncp_forward.1} parent=1 // pred_fallthru
      _
    // Predicated region
    $region30: #{ncp_forward.1} parent=1 // pred_check
      _
    $region31: #{ncp_forward.1} parent=1 // pred_check_branch
      %31 = sbr.rel (0) target = $region33
    $region32: #{ncp_forward.1} parent=1 // pred_region
      _
    $region33: #{ncp_forward.1} parent=1 // pred_fallthru
      _
    %v32 = vld [vmem:[%s0] sm:$0xff]
    %v33 = vld [vmem:[%s0 + $0x8] sm:$0xff]
    %v34 = vld [vmem:[%s1] sm:$0xff]
    %v35 = vld [vmem:[%s2] sm:$0x1]
    %v37 = vlaneseq
    %v38 = vshrl.u32 %v37, 7
    %v39 = vsub.s32 0, %v38
    %v40 = vrot.slane %v35, %v39
    %vm42 = vcmask 64512
    %v44 = vsel %vm42, %v32, 0
    %v47 = vsel %vm42, %v33, 0
    %49 = vmatprep.subr.mxu0 0.0
    %50 = vmatpush1.msra.mxu0 %v34
    %51 = vmatprep.subr.mxu0 0.0
    %52 = vmatpush1.msra.mxu0 0.0
    %53 = vmatprep.subr.mxu0 0.0
    %54 = vmatpush1.msra.mxu0 0.0
    %55 = vmatprep.subr.mxu0 0.0
    %56 = vmatpush1.msra.mxu0 0.0
    %57 = vmatprep.subr.mxu0 0.0
    %58 = vmatpush1.msra.mxu0 0.0
    %59 = vmatprep.subr.mxu0 0.0
    %60 = vmatpush1.msra.mxu0 0.0
    %61 = vmatprep.subr.mxu0 0.0
    %62 = vmatpush1.msra.mxu0 0.0
    %63 = vmatprep.subr.mxu0 0.0
    %64 = vmatpush1.msra.mxu0 0.0
    %65 = vmatprep.subr.mxu0 0.0
    %66 = vmatpush1.msra.mxu0 0.0
    %67 = vmatprep.subr.mxu0 0.0
    %68 = vmatpush1.msra.mxu0 0.0
    %69 = vmatprep.subr.mxu0 0.0
    %70 = vmatpush1.msra.mxu0 0.0
    %71 = vmatprep.subr.mxu0 0.0
    %72 = vmatpush1.msra.mxu0 0.0
    %73 = vmatprep.subr.mxu0 0.0
    %74 = vmatpush1.msra.mxu0 0.0
    %75 = vmatprep.subr.mxu0 0.0
    %76 = vmatpush1.msra.mxu0 0.0
    %77 = vmatprep.subr.mxu0 0.0
    %78 = vmatpush1.msra.mxu0 0.0
    %79 = vmatprep.subr.mxu0 0.0
    %80 = vmatpush1.msra.mxu0 0.0
    %81 = vmatprep.subr.mxu0 0.0
    %82 = vmatpush1.msra.mxu0 0.0
    %83 = vmatprep.subr.mxu0 0.0
    %84 = vmatpush1.msra.mxu0 0.0
    %85 = vmatprep.subr.mxu0 0.0
    %86 = vmatpush1.msra.mxu0 0.0
    %87 = vmatprep.subr.mxu0 0.0
    %88 = vmatpush1.msra.mxu0 0.0
    %89 = vmatprep.subr.mxu0 0.0
    %90 = vmatpush1.msra.mxu0 0.0
    %91 = vmatprep.subr.mxu0 0.0
    %92 = vmatpush1.msra.mxu0 0.0
    %93 = vmatprep.subr.mxu0 0.0
    %94 = vmatpush1.msra.mxu0 0.0
    %95 = vmatprep.subr.mxu0 0.0
    %96 = vmatpush1.msra.mxu0 0.0
    %97 = vmatprep.subr.mxu0 0.0
    %98 = vmatpush1.msra.mxu0 0.0
    %99 = vmatprep.subr.mxu0 0.0
    %100 = vmatpush1.msra.mxu0 0.0
    %101 = vmatprep.subr.mxu0 0.0
    %102 = vmatpush1.msra.mxu0 0.0
    %103 = vmatprep.subr.mxu0 0.0
    %104 = vmatpush1.msra.mxu0 0.0
    %105 = vmatprep.subr.mxu0 0.0
    %106 = vmatpush1.msra.mxu0 0.0
    %107 = vmatprep.subr.mxu0 0.0
    %108 = vmatpush1.msra.mxu0 0.0
    %109 = vmatprep.subr.mxu0 0.0
    %110 = vmatpush1.msra.mxu0 0.0
    %111 = vmatprep.subr.mxu0 0.0
    %112 = vmatpush1.msra.mxu0 0.0
    %113 = vmatprep.mubr.f32.mxu0 0.0
    %114 = vmatmul.mubr.f32.gmra.mrb[0].mxu0 %v44
    %v115 = vpop.f32.mrb[0].mxu0
    %v116 = vadd.f32 %v40, %v115
    %v117 = vpop.f32.mrb[0].mxu0
    %118 = vmatprep.mubr.f32.mxu0 0.0
    %119 = vmatmul.mubr.f32.gmra.mrb[0].mxu0 %v47
    %v120 = vpop.f32.mrb[0].mxu0
    %v121 = vadd.f32 %v40, %v120
    %v122 = vpop.f32.mrb[0].mxu0
    %123 = vdwg.mxu0
    %vm124 = vcmp.gt.f32.partialorder %v116, 0.0
    %vm125 = vcmp.gt.f32.partialorder %v121, 0.0
    %v126 = vld [vmem:[%s3] sm:$0x1]
    %v128 = vlaneseq
    %v129 = vshrl.u32 %v128, 7
    %v130 = vsub.s32 0, %v129
    %v131 = vrot.slane %v126, %v130
    %v133 = vmul.f32 %v131, %v116
    %v134 = vmul.f32 %v131, %v121
    %v135 = vsel %vm124, %v116, %v133
    %v136 = vsel %vm125, %v121, %v134
    %v137 = vld [vmem:[%s4] sm:$0xff]
    %v138 = vld [vmem:[%s4 + $0x8] sm:$0xff]
    %v139 = vld [vmem:[%s4 + $0x10] sm:$0xff]
    %v140 = vld [vmem:[%s4 + $0x18] sm:$0xff]
    %v141 = vld [vmem:[%s4 + $0x20] sm:$0xff]
    %v142 = vld [vmem:[%s4 + $0x28] sm:$0xff]
    %v143 = vld [vmem:[%s4 + $0x30] sm:$0xff]
    %v144 = vld [vmem:[%s4 + $0x38] sm:$0xff]
    %v145 = vld [vmem:[%s5] sm:$0x1]
    %v147 = vlaneseq
    %v148 = vshrl.u32 %v147, 7
    %v149 = vsub.s32 0, %v148
    %v150 = vrot.slane %v145, %v149
    %vm152 = vcmask 523264
    %v154 = vsel %vm152, %v135, 0
    %v157 = vsel %vm152, %v136, 0
    %159 = vmatprep.subr.mxu0 0.0
    %160 = vmatpush1.msra.mxu0 %v137
    %161 = vmatprep.subr.mxu0 0.0
    %162 = vmatpush1.msra.mxu0 %v138
    %163 = vmatprep.subr.mxu0 0.0
    %164 = vmatpush1.msra.mxu0 %v139
    %165 = vmatprep.subr.mxu0 0.0
    %166 = vmatpush1.msra.mxu0 %v140
    %167 = vmatprep.subr.mxu0 0.0
    %168 = vmatpush1.msra.mxu0 %v141
    %169 = vmatprep.subr.mxu0 0.0
    %170 = vmatpush1.msra.mxu0 %v142
    %171 = vmatprep.subr.mxu0 0.0
    %172 = vmatpush1.msra.mxu0 %v143
    %173 = vmatprep.subr.mxu0 0.0
    %174 = vmatpush1.msra.mxu0 %v144
    %175 = vmatprep.subr.mxu0 0.0
    %176 = vmatpush1.msra.mxu0 0.0
    %177 = vmatprep.subr.mxu0 0.0
    %178 = vmatpush1.msra.mxu0 0.0
    %179 = vmatprep.subr.mxu0 0.0
    %180 = vmatpush1.msra.mxu0 0.0
    %181 = vmatprep.subr.mxu0 0.0
    %182 = vmatpush1.msra.mxu0 0.0
    %183 = vmatprep.subr.mxu0 0.0
    %184 = vmatpush1.msra.mxu0 0.0
    %185 = vmatprep.subr.mxu0 0.0
    %186 = vmatpush1.msra.mxu0 0.0
    %187 = vmatprep.subr.mxu0 0.0
    %188 = vmatpush1.msra.mxu0 0.0
    %189 = vmatprep.subr.mxu0 0.0
    %190 = vmatpush1.msra.mxu0 0.0
    %191 = vmatprep.subr.mxu0 0.0
    %192 = vmatpush1.msra.mxu0 0.0
    %193 = vmatprep.subr.mxu0 0.0
    %194 = vmatpush1.msra.mxu0 0.0
    %195 = vmatprep.subr.mxu0 0.0
    %196 = vmatpush1.msra.mxu0 0.0
    %197 = vmatprep.subr.mxu0 0.0
    %198 = vmatpush1.msra.mxu0 0.0
    %199 = vmatprep.subr.mxu0 0.0
    %200 = vmatpush1.msra.mxu0 0.0
    %201 = vmatprep.subr.mxu0 0.0
    %202 = vmatpush1.msra.mxu0 0.0
    %203 = vmatprep.subr.mxu0 0.0
    %204 = vmatpush1.msra.mxu0 0.0
    %205 = vmatprep.subr.mxu0 0.0
    %206 = vmatpush1.msra.mxu0 0.0
    %207 = vmatprep.subr.mxu0 0.0
    %208 = vmatpush1.msra.mxu0 0.0
    %209 = vmatprep.subr.mxu0 0.0
    %210 = vmatpush1.msra.mxu0 0.0
    %211 = vmatprep.subr.mxu0 0.0
    %212 = vmatpush1.msra.mxu0 0.0
    %213 = vmatprep.subr.mxu0 0.0
    %214 = vmatpush1.msra.mxu0 0.0
    %215 = vmatprep.subr.mxu0 0.0
    %216 = vmatpush1.msra.mxu0 0.0
    %217 = vmatprep.subr.mxu0 0.0
    %218 = vmatpush1.msra.mxu0 0.0
    %219 = vmatprep.subr.mxu0 0.0
    %220 = vmatpush1.msra.mxu0 0.0
    %221 = vmatprep.subr.mxu0 0.0
    %222 = vmatpush1.msra.mxu0 0.0
    %223 = vmatprep.mubr.f32.mxu0 0.0
    %224 = vmatmul.mubr.f32.gmra.mrb[0].mxu0 %v154
    %v225 = vpop.f32.mrb[0].mxu0
    %v226 = vadd.f32 %v150, %v225
    %v227 = vpop.f32.mrb[0].mxu0
    %228 = vmatprep.mubr.f32.mxu0 0.0
    %229 = vmatmul.mubr.f32.gmra.mrb[0].mxu0 %v157
    %v230 = vpop.f32.mrb[0].mxu0
    %v231 = vadd.f32 %v150, %v230
    %v232 = vpop.f32.mrb[0].mxu0
    %233 = vdwg.mxu0
    %v234 = vld [vmem:[#allocation2] sm:$0x1]
    %v235 = vlaneseq
    %v236 = vand.u32 %v235, 127
    %v237 = vcvt.s32.f32 %v236
    %v238 = vadd.f32 %v226, 0.0
    %v240 = vrot.slane %v226, 2
    %v242 = vadd.f32 %v238, %v240
    %v244 = vrot.slane %v231, 4
    %v246 = vadd.f32 %v242, %v244
    %v247 = vrot.slane %v231, 6
    %v249 = vadd.f32 %v246, %v247
    %v250 = vadd.f32 %v249, %v231
    %v251 = vrot.slane %v231, 2
    %v253 = vadd.f32 %v250, %v251
    %v254 = vadd.f32 %v226, %v240
    %v255 = vsub.f32 %v253, %v226
    %v256 = vrot.slane %v226, 4
    %v258 = vadd.f32 %v254, %v256
    %v260 = vrot.slane %v255, 4
    %261 = vrot.lane.b32.xlu0 %v260, 127
    %v262 = vpop.permute.xlu0 %261
    %v264 = vadd.f32 %v258, %v262
    %v266 = vlaneseq
    %v267 = vshrl.u32 %v266, 7
    %v268 = vsub.s32 0, %v267
    %v269 = vrot.slane %v234, %v268
    %v271 = vadd.f32 %v264, %v269
    %vm272 = vcmp.lt.f32.partialorder %v237, 1.0
    %vm273 = vcmp.eq.f32.partialorder %v237, 1.0
    %v274 = vadd.f32 %v271, %v269
    %276 = vset.pattern.permute.xlu0 0
    %277 = vperm.xlu0 %276, %v274
    %v278 = vpop.permute.xlu0 %277
    %v280 = vsel %vm273, %v278, -1e+30
    %282 = vset.pattern.permute.xlu0 0
    %283 = vperm.xlu0 %282, %v271
    %v284 = vpop.permute.xlu0 %283
    %v286 = vsel %vm272, %v284, %v280
    %s287 = scalar_lea.vmem %s7, 4
    %v288 = vld [vmem:[%s287] sm:$0x3]
    %v289 = vadd.f32 %v286, %v288
    %vm290 = vcmask 1041408
    %v291 = vsel %vm290, %v289, -inf
    %292 = vmax.xlane.f32.xlu0 %v291
    %v293 = vpop.xlane.xlu0 %292
    %vm294 = vcmp.eq.f32.partialorder %v289, %v293
    %v295 = vsel %vm294, %v237, 128.0
    %v296 = vsel %vm290, %v295, inf
    %297 = vmin.xlane.f32.xlu0 %v296
    %v298 = vpop.xlane.xlu0 %297
    %vm299 = vcmp.eq.f32.partialorder %v298, %v237
    %v300 = vsel %vm299, 1, 0
    %v301 = vcvt.s32.f32 %v300
    %v302 = vsel %vm290, %v301, 0.0
    %v303 = vrot.slane %v302, 4
    %v304 = vadd.f32 %v302, %v303
    %v305 = vrot.slane %v304, 2
    %v306 = vadd.f32 %v304, %v305
    %v307 = vrot.slane %v306, 1
    %v308 = vadd.f32 %v306, %v307
    %309 = vmax.xlane.f32.xlu0 %v308
    %v310 = vpop.xlane.xlu0 %309
    %vm311 = vcmp.eq.f32.partialorder %v308, %v310
    %v312 = vsel %vm311, %v237, 128.0
    %313 = vmin.xlane.f32.xlu0 %v312
    %v314 = vpop.xlane.xlu0 %313
    %vm315 = vcmp.eq.f32.partialorder %v237, 2.0
    %v316 = vsel %vm315, %v314, 0.0
    %vm317 = vcmp.eq.f32.partialorder %v314, 1.0
    %v318 = vsel %vm317, 1, 0
    %v319 = vcvt.s32.f32 %v318
    %v320 = vadd.f32 %v319, 1.0
    %v321 = vsub.f32 %v255, %v240
    %v322 = vrot.slane %v226, 6
    %v324 = vadd.f32 %v258, %v322
    %v326 = vrot.slane %v321, 4
    %327 = vrot.lane.b32.xlu0 %v326, 127
    %v328 = vpop.permute.xlu0 %327
    %v330 = vadd.f32 %v324, %v328
    %v331 = vmul.f32 %v320, %v234
    %v333 = vlaneseq
    %v334 = vshrl.u32 %v333, 7
    %v335 = vsub.s32 0, %v334
    %v336 = vrot.slane %v331, %v335
    %v338 = vadd.f32 %v330, %v336
    %vm339 = vcmp.lt.f32.partialorder %v237, %v320
    %vm340 = vcmp.eq.f32.partialorder %v237, %v320
    %v341 = vadd.f32 %v338, %v269
    %343 = vset.pattern.permute.xlu0 0
    %344 = vperm.xlu0 %343, %v341
    %v345 = vpop.permute.xlu0 %344
    %v347 = vsel %vm340, %v345, -1e+30
    %349 = vset.pattern.permute.xlu0 0
    %350 = vperm.xlu0 %349, %v338
    %v351 = vpop.permute.xlu0 %350
    %v353 = vsel %vm339, %v351, %v347
    %s354 = scalar_lea.vmem %s7, 6
    %v355 = vld [vmem:[%s354] sm:$0x3]
    %v356 = vadd.f32 %v353, %v355
    %v357 = vsel %vm290, %v356, -inf
    %358 = vmax.xlane.f32.xlu0 %v357
    %v359 = vpop.xlane.xlu0 %358
    %vm360 = vcmp.eq.f32.partialorder %v356, %v359
    %v361 = vsel %vm360, %v237, 128.0
    %v362 = vsel %vm290, %v361, inf
    %363 = vmin.xlane.f32.xlu0 %v362
    %v364 = vpop.xlane.xlu0 %363
    %vm365 = vcmp.eq.f32.partialorder %v364, %v237
    %v366 = vsel %vm365, 1, 0
    %v367 = vcvt.s32.f32 %v366
    %v368 = vsel %vm290, %v367, 0.0
    %v369 = vrot.slane %v368, 4
    %v370 = vadd.f32 %v368, %v369
    %v371 = vrot.slane %v370, 2
    %v372 = vadd.f32 %v370, %v371
    %v373 = vrot.slane %v372, 1
    %v374 = vadd.f32 %v372, %v373
    %375 = vmax.xlane.f32.xlu0 %v374
    %v376 = vpop.xlane.xlu0 %375
    %vm377 = vcmp.eq.f32.partialorder %v374, %v376
    %v378 = vsel %vm377, %v237, 128.0
    %379 = vmin.xlane.f32.xlu0 %v378
    %v380 = vpop.xlane.xlu0 %379
    %vm381 = vcmp.eq.f32.partialorder %v237, 3.0
    %v382 = vsel %vm381, %v380, %v316
    %vm383 = vcmp.eq.f32.partialorder %v380, %v320
    %v384 = vsel %vm383, 1, 0
    %v385 = vcvt.s32.f32 %v384
    %v386 = vadd.f32 %v320, %v385
    %v387 = vsub.f32 %v321, %v244
    %v388 = vadd.f32 %v324, %v231
    %v390 = vrot.slane %v387, 4
    %391 = vrot.lane.b32.xlu0 %v390, 127
    %v392 = vpop.permute.xlu0 %391
    %v394 = vadd.f32 %v388, %v392
    %v395 = vmul.f32 %v386, %v234
    %v397 = vlaneseq
    %v398 = vshrl.u32 %v397, 7
    %v399 = vsub.s32 0, %v398
    %v400 = vrot.slane %v395, %v399
    %v402 = vadd.f32 %v394, %v400
    %vm403 = vcmp.lt.f32.partialorder %v237, %v386
    %vm404 = vcmp.eq.f32.partialorder %v237, %v386
    %v405 = vadd.f32 %v402, %v269
    %407 = vset.pattern.permute.xlu0 0
    %408 = vperm.xlu0 %407, %v405
    %v409 = vpop.permute.xlu0 %408
    %v411 = vsel %vm404, %v409, -1e+30
    %413 = vset.pattern.permute.xlu0 0
    %414 = vperm.xlu0 %413, %v402
    %v415 = vpop.permute.xlu0 %414
    %v417 = vsel %vm403, %v415, %v411
    %s418 = scalar_lea.vmem %s7, 8
    %v419 = vld [vmem:[%s418] sm:$0x3]
    %v420 = vadd.f32 %v417, %v419
    %v421 = vsel %vm290, %v420, -inf
    %422 = vmax.xlane.f32.xlu0 %v421
    %v423 = vpop.xlane.xlu0 %422
    %vm424 = vcmp.eq.f32.partialorder %v420, %v423
    %v425 = vsel %vm424, %v237, 128.0
    %v426 = vsel %vm290, %v425, inf
    %427 = vmin.xlane.f32.xlu0 %v426
    %v428 = vpop.xlane.xlu0 %427
    %vm429 = vcmp.eq.f32.partialorder %v428, %v237
    %v430 = vsel %vm429, 1, 0
    %v431 = vcvt.s32.f32 %v430
    %v432 = vsel %vm290, %v431, 0.0
    %v433 = vrot.slane %v432, 4
    %v434 = vadd.f32 %v432, %v433
    %v435 = vrot.slane %v434, 2
    %v436 = vadd.f32 %v434, %v435
    %v437 = vrot.slane %v436, 1
    %v438 = vadd.f32 %v436, %v437
    %439 = vmax.xlane.f32.xlu0 %v438
    %v440 = vpop.xlane.xlu0 %439
    %vm441 = vcmp.eq.f32.partialorder %v438, %v440
    %v442 = vsel %vm441, %v237, 128.0
    %443 = vmin.xlane.f32.xlu0 %v442
    %v444 = vpop.xlane.xlu0 %443
    %vm445 = vcmp.eq.f32.partialorder %v237, 4.0
    %v446 = vsel %vm445, %v444, %v382
    %vm447 = vcmp.eq.f32.partialorder %v444, %v386
    %v448 = vsel %vm447, 1, 0
    %v449 = vcvt.s32.f32 %v448
    %v450 = vadd.f32 %v386, %v449
    %v451 = vsub.f32 %v387, %v247
    %v452 = vadd.f32 %v388, %v251
    %v454 = vrot.slane %v451, 4
    %455 = vrot.lane.b32.xlu0 %v454, 127
    %v456 = vpop.permute.xlu0 %455
    %v458 = vadd.f32 %v452, %v456
    %v459 = vmul.f32 %v450, %v234
    %v461 = vlaneseq
    %v462 = vshrl.u32 %v461, 7
    %v463 = vsub.s32 0, %v462
    %v464 = vrot.slane %v459, %v463
    %v466 = vadd.f32 %v458, %v464
    %vm467 = vcmp.lt.f32.partialorder %v237, %v450
    %vm468 = vcmp.eq.f32.partialorder %v237, %v450
    %v469 = vadd.f32 %v466, %v269
    %471 = vset.pattern.permute.xlu0 0
    %472 = vperm.xlu0 %471, %v469
    %v473 = vpop.permute.xlu0 %472
    %v475 = vsel %vm468, %v473, -1e+30
    %477 = vset.pattern.permute.xlu0 0
    %478 = vperm.xlu0 %477, %v466
    %v479 = vpop.permute.xlu0 %478
    %v481 = vsel %vm467, %v479, %v475
    %s482 = scalar_lea.vmem %s7, 10
    %v483 = vld [vmem:[%s482] sm:$0x3]
    %v484 = vadd.f32 %v481, %v483
    %v485 = vsel %vm290, %v484, -inf
    %486 = vmax.xlane.f32.xlu0 %v485
    %v487 = vpop.xlane.xlu0 %486
    %vm488 = vcmp.eq.f32.partialorder %v484, %v487
    %v489 = vsel %vm488, %v237, 128.0
    %v490 = vsel %vm290, %v489, inf
    %491 = vmin.xlane.f32.xlu0 %v490
    %v492 = vpop.xlane.xlu0 %491
    %vm493 = vcmp.eq.f32.partialorder %v492, %v237
    %v494 = vsel %vm493, 1, 0
    %v495 = vcvt.s32.f32 %v494
    %v496 = vsel %vm290, %v495, 0.0
    %v497 = vrot.slane %v496, 4
    %v498 = vadd.f32 %v496, %v497
    %v499 = vrot.slane %v498, 2
    %v500 = vadd.f32 %v498, %v499
    %v501 = vrot.slane %v500, 1
    %v502 = vadd.f32 %v500, %v501
    %503 = vmax.xlane.f32.xlu0 %v502
    %v504 = vpop.xlane.xlu0 %503
    %vm505 = vcmp.eq.f32.partialorder %v502, %v504
    %v506 = vsel %vm505, %v237, 128.0
    %507 = vmin.xlane.f32.xlu0 %v506
    %v508 = vpop.xlane.xlu0 %507
    %vm509 = vcmp.eq.f32.partialorder %v237, 5.0
    %v510 = vsel %vm509, %v508, %v446
    %vm511 = vcmp.eq.f32.partialorder %v508, %v450
    %v512 = vsel %vm511, 1, 0
    %v513 = vcvt.s32.f32 %v512
    %v514 = vadd.f32 %v450, %v513
    %v515 = vsub.f32 %v451, %v231
    %v516 = vadd.f32 %v452, %v244
    %v518 = vrot.slane %v515, 4
    %519 = vrot.lane.b32.xlu0 %v518, 127
    %v520 = vpop.permute.xlu0 %519
    %v522 = vadd.f32 %v516, %v520
    %v523 = vmul.f32 %v514, %v234
    %v525 = vlaneseq
    %v526 = vshrl.u32 %v525, 7
    %v527 = vsub.s32 0, %v526
    %v528 = vrot.slane %v523, %v527
    %v530 = vadd.f32 %v522, %v528
    %vm531 = vcmp.lt.f32.partialorder %v237, %v514
    %vm532 = vcmp.eq.f32.partialorder %v237, %v514
    %v533 = vadd.f32 %v530, %v269
    %535 = vset.pattern.permute.xlu0 0
    %536 = vperm.xlu0 %535, %v533
    %v537 = vpop.permute.xlu0 %536
    %v539 = vsel %vm532, %v537, -1e+30
    %541 = vset.pattern.permute.xlu0 0
    %542 = vperm.xlu0 %541, %v530
    %v543 = vpop.permute.xlu0 %542
    %v545 = vsel %vm531, %v543, %v539
    %s546 = scalar_lea.vmem %s7, 12
    %v547 = vld [vmem:[%s546] sm:$0x3]
    %v548 = vadd.f32 %v545, %v547
    %v549 = vsel %vm290, %v548, -inf
    %550 = vmax.xlane.f32.xlu0 %v549
    %v551 = vpop.xlane.xlu0 %550
    %vm552 = vcmp.eq.f32.partialorder %v548, %v551
    %v553 = vsel %vm552, %v237, 128.0
    %v554 = vsel %vm290, %v553, inf
    %555 = vmin.xlane.f32.xlu0 %v554
    %v556 = vpop.xlane.xlu0 %555
    %vm557 = vcmp.eq.f32.partialorder %v556, %v237
    %v558 = vsel %vm557, 1, 0
    %v559 = vcvt.s32.f32 %v558
    %v560 = vsel %vm290, %v559, 0.0
    %v561 = vrot.slane %v560, 4
    %v562 = vadd.f32 %v560, %v561
    %v563 = vrot.slane %v562, 2
    %v564 = vadd.f32 %v562, %v563
    %v565 = vrot.slane %v564, 1
    %v566 = vadd.f32 %v564, %v565
    %567 = vmax.xlane.f32.xlu0 %v566
    %v568 = vpop.xlane.xlu0 %567
    %vm569 = vcmp.eq.f32.partialorder %v566, %v568
    %v570 = vsel %vm569, %v237, 128.0
    %571 = vmin.xlane.f32.xlu0 %v570
    %v572 = vpop.xlane.xlu0 %571
    %vm573 = vcmp.eq.f32.partialorder %v237, 6.0
    %v574 = vsel %vm573, %v572, %v510
    %vm575 = vcmp.eq.f32.partialorder %v572, %v514
    %v576 = vsel %vm575, 1, 0
    %v577 = vcvt.s32.f32 %v576
    %v578 = vadd.f32 %v514, %v577
    %v579 = vadd.f32 %v516, %v247
    %v580 = vadd.f32 %v579, 0.0
    %v581 = vmul.f32 %v578, %v234
    %v583 = vlaneseq
    %v584 = vshrl.u32 %v583, 7
    %v585 = vsub.s32 0, %v584
    %v586 = vrot.slane %v581, %v585
    %v588 = vadd.f32 %v580, %v586
    %vm589 = vcmp.lt.f32.partialorder %v237, %v578
    %vm590 = vcmp.eq.f32.partialorder %v237, %v578
    %v591 = vadd.f32 %v588, %v269
    %593 = vset.pattern.permute.xlu0 0
    %594 = vperm.xlu0 %593, %v591
    %v595 = vpop.permute.xlu0 %594
    %v597 = vsel %vm590, %v595, -1e+30
    %599 = vset.pattern.permute.xlu0 0
    %600 = vperm.xlu0 %599, %v588
    %v601 = vpop.permute.xlu0 %600
    %v603 = vsel %vm589, %v601, %v597
    %s604 = scalar_lea.vmem %s7, 14
    %v605 = vld [vmem:[%s604] sm:$0x3]
    %v606 = vadd.f32 %v603, %v605
    %v607 = vsel %vm290, %v606, -inf
    %608 = vmax.xlane.f32.xlu0 %v607
    %v609 = vpop.xlane.xlu0 %608
    %vm610 = vcmp.eq.f32.partialorder %v606, %v609
    %v611 = vsel %vm610, %v237, 128.0
    %v612 = vsel %vm290, %v611, inf
    %613 = vmin.xlane.f32.xlu0 %v612
    %v614 = vpop.xlane.xlu0 %613
    %vm615 = vcmp.eq.f32.partialorder %v614, %v237
    %v616 = vsel %vm615, 1, 0
    %v617 = vcvt.s32.f32 %v616
    %v618 = vsel %vm290, %v617, 0.0
    %v619 = vrot.slane %v618, 4
    %v620 = vadd.f32 %v618, %v619
    %v621 = vrot.slane %v620, 2
    %v622 = vadd.f32 %v620, %v621
    %v623 = vrot.slane %v622, 1
    %v624 = vadd.f32 %v622, %v623
    %625 = vmax.xlane.f32.xlu0 %v624
    %v626 = vpop.xlane.xlu0 %625
    %vm627 = vcmp.eq.f32.partialorder %v624, %v626
    %v628 = vsel %vm627, %v237, 128.0
    %629 = vmin.xlane.f32.xlu0 %v628
    %v630 = vpop.xlane.xlu0 %629
    %vm631 = vcmp.eq.f32.partialorder %v237, 7.0
    %v632 = vsel %vm631, %v630, %v574
    %v633 = vcvt.f32.s32.to.zero.pseudo %v632
    %vm634 = vcmask 57344
    %635 = vst.msk [vmem:[#allocation3] sm:$0x1] %vm634, %v633
    // Predicated region
    $region34: #{ncp_forward.1} parent=1 // pred_check
      _
    $region35: #{ncp_forward.1} parent=1 // pred_check_branch
      %637 = sbr.rel (0) target = $region37
    $region36: #{ncp_forward.1} parent=1 // pred_region
      %s639 = ssub.s32 16, 16
      %640 = vsyncadd [#allocation4], %s639
      %s642 = sshll.u32 [#allocation3], 4
      %s643 = int_to_ptr.vmem [resolvable:$true] %s642
      %645 = dma.vmem_to_hbm [thread:$0]  %s643, 16, %s8, [#allocation4]
    $region37: #{ncp_forward.1} parent=1 // pred_fallthru
      _
    // Predicated region
    $region38: #{ncp_forward.1} parent=1 // pred_check
      _
    $region39: #{ncp_forward.1} parent=1 // pred_check_branch
      %647 = sbr.rel (0) target = $region41
    $region40: #{ncp_forward.1} parent=1 // pred_region
      %648 = dma.done [#allocation4], 16
    $region41: #{ncp_forward.1} parent=1 // pred_fallthru
      _
    %649 = vsyncpa [#allocation4], 1

</llo_original>
